<compile_context>
chip_gen: v7x
topology: tpu7x:2x2x1
jax: 0.10.0
libtpu: 0.0.40
codegen_flags: <defaults>
</compile_context>

<pallas_src>
import math

import jax
import jax.numpy as jnp
from jax.experimental import pallas as pl
from jax.experimental.pallas import tpu as pltpu

STATE_DIM = 9
ACTION_DIM = (3, 2)          # (num discrete actions, continuous action dim)
HIDDEN = 64
ACTION_STD_INIT = 0.6
BATCH = 8

LANES = 128
# ---- weight-slab column layout (each block is 128 lanes unless noted) ----
_W1 = 0        # cols   0:256 : [w_d1 | w_v1 | w_c1(states part) | 0]   (rows 0:S)
_W2 = 256      # cols 256:384 : block-diag(w_d2, w_v2)
_W3 = 384      # cols 384:512 : cols 0:A0 = w_d3 (rows 0:64), col A0 = w_v3 (rows 64:128)
_WC1 = 512     # cols 512:640 : w_c1(probs part)  (rows 0:A0)
_WC2 = 640     # cols 640:768 : w_c2              (rows 0:64)
_WC3 = 768     # cols 768:896 : w_c3 at cols 8:8+A1 (rows 0:64)
W_COLS = 896
B_COLS = 1024  # bias slab has one extra 128-wide block holding -0.5/var

# ---- output-slab lane layout ----
_O_PROBS = 0   # lanes 0:A0   discrete action probs
_O_MEAN = 8    # lanes 8:8+A1 continuous action mean
_O_DLP = 16    # discrete log-prob
_O_CLPQ = 17   # -0.5 * sum(diff^2 / var)   (constant part added in wrapper)
_O_VAL = 18    # state value
_O_DENT = 19   # discrete entropy


def _evaluate_kernel(data_ref, w_ref, b_ref, out_ref):
    f32 = jnp.float32
    a0, _ = ACTION_DIM
    bt = out_ref.shape[0]

    x = data_ref[:, 0:LANES]                 # states at lanes 0:STATE_DIM, rest 0
    onehot = data_ref[:, LANES:2 * LANES]    # one-hot discrete action at lanes 0:A0
    cact = data_ref[:, 2 * LANES:3 * LANES]  # continuous action at lanes _O_MEAN:_O_MEAN+A1

    def dense(h, c0, c1):
        return (jnp.dot(h, w_ref[:, c0:c1], preferred_element_type=f32)
                + b_ref[:, c0:c1])

    # ---- fused layer 1: [discrete L1 | critic L1 | continuous L1 (states part)]
    h1 = dense(x, _W1, _W1 + 2 * LANES)            # [bt, 256]
    h_dv = jnp.tanh(h1[:, 0:LANES])                # [disc hidden | critic hidden]
    pre_c = h1[:, LANES:2 * LANES]                 # x @ w_c1_states (bias/tanh later)

    # ---- fused layer 2 (block diagonal) + fused heads (logits | value)
    h_dv2 = jnp.tanh(dense(h_dv, _W2, _W2 + LANES))
    head = dense(h_dv2, _W3, _W3 + LANES)          # lanes 0:A0 logits, lane A0 value

    lane = jax.lax.broadcasted_iota(jnp.int32, (bt, LANES), 1)
    amask = lane < a0

    # ---- masked softmax over lanes 0:A0 (value lane excluded)
    logits = jnp.where(amask, head, f32(-1e30))
    m = jnp.max(logits, axis=-1, keepdims=True)
    e = jnp.where(amask, jnp.exp(logits - m), 0.0)
    z = jnp.sum(e, axis=-1, keepdims=True)
    inv_z = pl.reciprocal(z, approx=True)
    inv_z = inv_z * (2.0 - z * inv_z)              # one Newton step for accuracy
    probs = e * inv_z                              # zero outside lanes 0:A0
    logp = (logits - m) - jnp.log(z)

    # Categorical log-prob / entropy; critic value extraction
    dlp = jnp.sum(onehot * logp, axis=-1, keepdims=True)
    dent = -jnp.sum(jnp.where(amask, probs * logp, 0.0), axis=-1, keepdims=True)
    val = jnp.sum(jnp.where(lane == a0, head, 0.0), axis=-1, keepdims=True)

    # ---- continuous actor (depends on probs -> stays serial)
    hc1 = jnp.tanh(pre_c + dense(probs, _WC1, _WC1 + LANES))
    hc2 = jnp.tanh(dense(hc1, _WC2, _WC2 + LANES))
    mean = jnp.tanh(dense(hc2, _WC3, _WC3 + LANES))   # mean sits at lanes 8:8+A1

    # ---- diagonal-MVN quadratic term: -0.5 * sum(diff^2 / var)
    neg_half_inv_var = b_ref[:, W_COLS:B_COLS]        # -0.5/var at mean lanes, 0 elsewhere
    diff = cact - mean
    clpq = jnp.sum(diff * diff * neg_half_inv_var, axis=-1, keepdims=True)

    # ---- single lane-dense output slab (probs and mean already lane-placed)
    out_ref[...] = (probs + mean
                    + jnp.where(lane == _O_DLP, dlp, 0.0)
                    + jnp.where(lane == _O_CLPQ, clpq, 0.0)
                    + jnp.where(lane == _O_VAL, val, 0.0)
                    + jnp.where(lane == _O_DENT, dent, 0.0))


def _round_up(x, m):
    return ((x + m - 1) // m) * m


def init_params(key, state_dim, action_dim, action_std_init):
    """Deterministic PyTorch-Linear-style init (uniform +/- 1/sqrt(fan_in)).
    Weights stored as [in_features, out_features]; biases as [1, out]."""
    a0, a1 = action_dim
    dims = {
        "d1": (state_dim, HIDDEN), "d2": (HIDDEN, HIDDEN), "d3": (HIDDEN, a0),
        "c1": (state_dim + a0, HIDDEN), "c2": (HIDDEN, HIDDEN), "c3": (HIDDEN, a1),
        "v1": (state_dim, HIDDEN), "v2": (HIDDEN, HIDDEN), "v3": (HIDDEN, 1),
    }
    params = {}
    for name, (fin, fout) in dims.items():
        key, kw, kb = jax.random.split(key, 3)
        bound = 1.0 / math.sqrt(fin)
        params["w_" + name] = jax.random.uniform(kw, (fin, fout), jnp.float32,
                                                 -bound, bound)
        params["b_" + name] = jax.random.uniform(kb, (1, fout), jnp.float32,
                                                 -bound, bound)
    params["action_var"] = jnp.full((1, a1), action_std_init * action_std_init,
                                    jnp.float32)
    return params


def pack_params(params):
    """Pack the 18 weight/bias tensors (+ -0.5/var) into two padded slabs."""
    a0, a1 = ACTION_DIM
    s, h = STATE_DIM, HIDDEN
    p = params

    w = jnp.zeros((LANES, W_COLS), jnp.float32)
    w = w.at[:s, 0:h].set(p["w_d1"])
    w = w.at[:s, h:2 * h].set(p["w_v1"])
    w = w.at[:s, 2 * h:3 * h].set(p["w_c1"][a0:, :])          # states part of c1
    w = w.at[0:h, _W2:_W2 + h].set(p["w_d2"])
    w = w.at[h:2 * h, _W2 + h:_W2 + 2 * h].set(p["w_v2"])
    w = w.at[0:h, _W3:_W3 + a0].set(p["w_d3"])
    w = w.at[h:2 * h, _W3 + a0:_W3 + a0 + 1].set(p["w_v3"])
    w = w.at[0:a0, _WC1:_WC1 + h].set(p["w_c1"][:a0, :])      # probs part of c1
    w = w.at[0:h, _WC2:_WC2 + h].set(p["w_c2"])
    w = w.at[0:h, _WC3 + _O_MEAN:_WC3 + _O_MEAN + a1].set(p["w_c3"])

    b = jnp.zeros((1, B_COLS), jnp.float32)
    b = b.at[:, 0:h].set(p["b_d1"])
    b = b.at[:, h:2 * h].set(p["b_v1"])
    b = b.at[:, _W2:_W2 + h].set(p["b_d2"])
    b = b.at[:, _W2 + h:_W2 + 2 * h].set(p["b_v2"])
    b = b.at[:, _W3:_W3 + a0].set(p["b_d3"])
    b = b.at[:, _W3 + a0:_W3 + a0 + 1].set(p["b_v3"])
    b = b.at[:, _WC1:_WC1 + h].set(p["b_c1"])
    b = b.at[:, _WC2:_WC2 + h].set(p["b_c2"])
    b = b.at[:, _WC3 + _O_MEAN:_WC3 + _O_MEAN + a1].set(p["b_c3"])
    b = b.at[:, W_COLS + _O_MEAN:W_COLS + _O_MEAN + a1].set(-0.5 / p["action_var"])
    return w, b


def pack_data(states, discrete_actions, continuous_actions, padded_batch):
    """One lane-dense per-batch input slab: [states | one-hot(d_act) | c_act]."""
    a0, a1 = ACTION_DIM
    b = states.shape[0]
    # Note: out-of-range discrete actions yield an all-zero one-hot row
    # (dlp = 0) rather than erroring like torch.distributions.Categorical.
    onehot = jax.nn.one_hot(discrete_actions, a0, dtype=jnp.float32)
    d = jnp.zeros((padded_batch, 3 * LANES), jnp.float32)
    d = d.at[:b, 0:STATE_DIM].set(states.astype(jnp.float32))
    d = d.at[:b, LANES:LANES + a0].set(onehot)
    d = d.at[:b, 2 * LANES + _O_MEAN:2 * LANES + _O_MEAN + a1].set(
        continuous_actions.astype(jnp.float32))
    return d


def actor_critic_evaluate(params, states, discrete_actions, continuous_actions,
                          *, batch_tile=256):
    """Pallas implementation of ActorCritic.evaluate()."""
    b = states.shape[0]
    a0, a1 = ACTION_DIM
    batch_tile = _round_up(batch_tile, 8)
    bt = min(batch_tile, _round_up(b, 8))
    padded_b = _round_up(b, bt)

    data = pack_data(states, discrete_actions, continuous_actions, padded_b)
    w_slab, b_slab = pack_params(params)

    slab = pl.pallas_call(
        _evaluate_kernel,
        out_shape=jax.ShapeDtypeStruct((padded_b, LANES), jnp.float32),
        grid=(padded_b // bt,),
        in_specs=[
            pl.BlockSpec((bt, 3 * LANES), lambda i: (i, 0)),
            pl.BlockSpec((LANES, W_COLS), lambda i: (0, 0)),   # weights stay resident
            pl.BlockSpec((1, B_COLS), lambda i: (0, 0)),
        ],
        out_specs=pl.BlockSpec((bt, LANES), lambda i: (i, 0)),
        compiler_params=pltpu.CompilerParams(
            dimension_semantics=("parallel",)),
    )(data, w_slab, b_slab)
    slab = slab[:b]

    # Constants depending only on action_var (hoisted out of the kernel).
    var = params["action_var"]
    log2pi = jnp.float32(math.log(2.0 * math.pi))
    log_det = jnp.sum(jnp.log(var))
    clp_const = -0.5 * (a1 * log2pi + log_det)
    cent_const = 0.5 * (a1 * (1.0 + log2pi) + log_det)

    dlp = slab[:, _O_DLP]
    clp = slab[:, _O_CLPQ] + clp_const
    vals = slab[:, _O_VAL:_O_VAL + 1]
    dent = slab[:, _O_DENT]
    cent = jnp.broadcast_to(cent_const, (b,)).astype(jnp.float32)
    probs = slab[:, _O_PROBS:_O_PROBS + a0]
    mean = slab[:, _O_MEAN:_O_MEAN + a1]
    # Match PyTorch return order/shapes of ActorCritic.evaluate().
    return dlp, clp, vals, dent, cent, probs, mean


def reference_evaluate(params, states, discrete_actions, continuous_actions):
    """Pure-JAX reference mirroring the PyTorch module."""
    def mlp3(x, p, tag):
        h = jnp.tanh(x @ p["w_" + tag + "1"] + p["b_" + tag + "1"])
        h = jnp.tanh(h @ p["w_" + tag + "2"] + p["b_" + tag + "2"])
        return h @ p["w_" + tag + "3"] + p["b_" + tag + "3"]

    logits = mlp3(states, params, "d")
    probs = jax.nn.softmax(logits, axis=-1)
    log_probs = jax.nn.log_softmax(logits, axis=-1)
    dlp = jnp.take_along_axis(log_probs, discrete_actions[:, None], axis=-1)[:, 0]
    dent = -jnp.sum(probs * log_probs, axis=-1)

    ds = jnp.concatenate([probs, states], axis=-1)
    mean = jnp.tanh(mlp3(ds, params, "c"))

    var = params["action_var"]                     # [1, A1]
    k = mean.shape[-1]
    diff = continuous_actions - mean
    log_det = jnp.sum(jnp.log(var))
    quad = jnp.sum(diff * diff / var, axis=-1)
    clp = -0.5 * (quad + k * jnp.log(2.0 * jnp.pi) + log_det)
    cent = jnp.full((states.shape[0],),
                    0.5 * (k * (1.0 + jnp.log(2.0 * jnp.pi)) + log_det))

    vals = mlp3(states, params, "v")
    return dlp, clp, vals, dent, cent, probs, mean


if __name__ == "__main__":
    key = jax.random.PRNGKey(0)
    kp, ks, ka, kc = jax.random.split(key, 4)
    params = init_params(kp, STATE_DIM, ACTION_DIM, ACTION_STD_INIT)

    states = jax.random.normal(ks, (BATCH, STATE_DIM), jnp.float32)
    discrete_actions = jax.random.randint(ka, (BATCH,), 0, ACTION_DIM[0])
    continuous_actions = jax.random.normal(kc, (BATCH, ACTION_DIM[1]), jnp.float32)

    outs = actor_critic_evaluate(params, states, discrete_actions,
                                 continuous_actions)
    outs = jax.block_until_ready(outs)

    refs = reference_evaluate(params, states, discrete_actions,
                              continuous_actions)
    names = ["dlp", "clp", "values", "dent", "cent", "probs", "mean"]
    for name, got, want in zip(names, outs, refs):
        assert got.shape == want.shape, (name, got.shape, want.shape)
        assert jnp.allclose(got, want, rtol=1e-3, atol=1e-3), (name, got, want)

    print("KERNEL_OK")
</pallas_src>

<mosaic_0001>
module attributes {stable_mosaic.version = 11 : i64} {
  func.func @_evaluate_kernel(%arg0: i32, %arg1: memref<8x384xf32, #tpu.memory_space<vmem>>, %arg2: memref<128x896xf32, #tpu.memory_space<vmem>>, %arg3: memref<1x1024xf32, #tpu.memory_space<vmem>>, %arg4: memref<8x128xf32, #tpu.memory_space<vmem>>) attributes {dimension_semantics = [#tpu.dimension_semantics<parallel>], iteration_bounds = array<i64: 1>, scalar_prefetch = 0 : i64, scratch_operands = 0 : i64, tpu.core_type = #tpu.core_type<tc>, window_params = [{transform_indices = @transform_0, window_bounds = array<i64: 8, 384>}, {pipeline_mode = #tpu.pipeline_mode<synchronous>, transform_indices = @transform_1, window_bounds = array<i64: 128, 896>}, {pipeline_mode = #tpu.pipeline_mode<synchronous>, transform_indices = @transform_2, window_bounds = array<i64: 1, 1024>}, {transform_indices = @transform_3, window_bounds = array<i64: 8, 128>}]} {
    %c0 = arith.constant 0 : index
    %c0_0 = arith.constant 0 : index
    %0 = vector.load %arg1[%c0, %c0_0] : memref<8x384xf32, #tpu.memory_space<vmem>>, vector<8x128xf32>
    %c0_1 = arith.constant 0 : index
    %c128 = arith.constant 128 : index
    %1 = vector.load %arg1[%c0_1, %c128] : memref<8x384xf32, #tpu.memory_space<vmem>>, vector<8x128xf32>
    %c0_2 = arith.constant 0 : index
    %c256 = arith.constant 256 : index
    %2 = vector.load %arg1[%c0_2, %c256] : memref<8x384xf32, #tpu.memory_space<vmem>>, vector<8x128xf32>
    %c0_3 = arith.constant 0 : index
    %c0_4 = arith.constant 0 : index
    %3 = vector.load %arg2[%c0_3, %c0_4] : memref<128x896xf32, #tpu.memory_space<vmem>>, vector<128x256xf32>
    %cst = arith.constant dense<0.000000e+00> : vector<8x256xf32>
    %4 = tpu.matmul %0, %3, %cst {dimension_numbers = #tpu.dot_dimension_numbers<[1], [0], [0], [1], [0, 0, 1, 1], [], []>} : vector<8x128xf32>, vector<128x256xf32>, vector<8x256xf32> -> vector<8x256xf32>
    %c0_5 = arith.constant 0 : index
    %c0_6 = arith.constant 0 : index
    %5 = vector.load %arg3[%c0_5, %c0_6] : memref<1x1024xf32, #tpu.memory_space<vmem>>, vector<1x256xf32>
    %6 = vector.broadcast %5 : vector<1x256xf32> to vector<8x256xf32>
    %7 = arith.addf %4, %6 : vector<8x256xf32>
    %8 = vector.extract_strided_slice %7 {offsets = [0, 0], sizes = [8, 128], strides = [1, 1]} : vector<8x256xf32> to vector<8x128xf32>
    %9 = math.tanh %8 : vector<8x128xf32>
    %10 = vector.extract_strided_slice %7 {offsets = [0, 128], sizes = [8, 128], strides = [1, 1]} : vector<8x256xf32> to vector<8x128xf32>
    %c0_7 = arith.constant 0 : index
    %c256_8 = arith.constant 256 : index
    %11 = vector.load %arg2[%c0_7, %c256_8] : memref<128x896xf32, #tpu.memory_space<vmem>>, vector<128x128xf32>
    %cst_9 = arith.constant dense<0.000000e+00> : vector<8x128xf32>
    %12 = tpu.matmul %9, %11, %cst_9 {dimension_numbers = #tpu.dot_dimension_numbers<[1], [0], [0], [1], [0, 0, 1, 1], [], []>} : vector<8x128xf32>, vector<128x128xf32>, vector<8x128xf32> -> vector<8x128xf32>
    %c0_10 = arith.constant 0 : index
    %c256_11 = arith.constant 256 : index
    %13 = vector.load %arg3[%c0_10, %c256_11] : memref<1x1024xf32, #tpu.memory_space<vmem>>, vector<1x128xf32>
    %14 = vector.broadcast %13 : vector<1x128xf32> to vector<8x128xf32>
    %15 = arith.addf %12, %14 : vector<8x128xf32>
    %16 = math.tanh %15 : vector<8x128xf32>
    %c0_12 = arith.constant 0 : index
    %c384 = arith.constant 384 : index
    %17 = vector.load %arg2[%c0_12, %c384] : memref<128x896xf32, #tpu.memory_space<vmem>>, vector<128x128xf32>
    %cst_13 = arith.constant dense<0.000000e+00> : vector<8x128xf32>
    %18 = tpu.matmul %16, %17, %cst_13 {dimension_numbers = #tpu.dot_dimension_numbers<[1], [0], [0], [1], [0, 0, 1, 1], [], []>} : vector<8x128xf32>, vector<128x128xf32>, vector<8x128xf32> -> vector<8x128xf32>
    %c0_14 = arith.constant 0 : index
    %c384_15 = arith.constant 384 : index
    %19 = vector.load %arg3[%c0_14, %c384_15] : memref<1x1024xf32, #tpu.memory_space<vmem>>, vector<1x128xf32>
    %20 = vector.broadcast %19 : vector<1x128xf32> to vector<8x128xf32>
    %21 = arith.addf %18, %20 : vector<8x128xf32>
    %22 = tpu.iota {dimensions = array<i32: 1>} : vector<8x128xi32>
    %c3_i32 = arith.constant 3 : i32
    %23 = vector.broadcast %c3_i32 : i32 to vector<8x128xi32>
    %24 = arith.cmpi slt, %22, %23 : vector<8x128xi32>
    %cst_16 = arith.constant -1.000000e+30 : f32
    %25 = vector.broadcast %cst_16 : f32 to vector<8x128xf32>
    %26 = arith.select %24, %21, %25 : vector<8x128xi1>, vector<8x128xf32>
    %cst_17 = arith.constant dense<0xFF800000> : vector<8xf32>
    %27 = vector.multi_reduction <maximumf>, %26, %cst_17 [1] : vector<8x128xf32> to vector<8xf32>
    %28 = vector.shape_cast %27 : vector<8xf32> to vector<8x1xf32>
    %29 = vector.broadcast %28 : vector<8x1xf32> to vector<8x128xf32>
    %30 = arith.subf %26, %29 : vector<8x128xf32>
    %31 = math.exp %30 : vector<8x128xf32>
    %cst_18 = arith.constant 0.000000e+00 : f32
    %32 = vector.broadcast %cst_18 : f32 to vector<8x128xf32>
    %33 = arith.select %24, %31, %32 : vector<8x128xi1>, vector<8x128xf32>
    %cst_19 = arith.constant dense<0.000000e+00> : vector<8xf32>
    %34 = vector.multi_reduction <add>, %33, %cst_19 [1] : vector<8x128xf32> to vector<8xf32>
    %35 = vector.shape_cast %34 : vector<8xf32> to vector<8x1xf32>
    %36 = tpu.reciprocal %35 {approx = true} : vector<8x1xf32> -> vector<8x1xf32>
    %37 = arith.mulf %35, %36 : vector<8x1xf32>
    %cst_20 = arith.constant 2.000000e+00 : f32
    %38 = vector.broadcast %cst_20 : f32 to vector<8x1xf32>
    %39 = arith.subf %38, %37 : vector<8x1xf32>
    %40 = arith.mulf %36, %39 : vector<8x1xf32>
    %41 = vector.broadcast %40 : vector<8x1xf32> to vector<8x128xf32>
    %42 = arith.mulf %33, %41 : vector<8x128xf32>
    %43 = vector.broadcast %28 : vector<8x1xf32> to vector<8x128xf32>
    %44 = arith.subf %26, %43 : vector<8x128xf32>
    %45 = math.log %35 : vector<8x1xf32>
    %46 = vector.broadcast %45 : vector<8x1xf32> to vector<8x128xf32>
    %47 = arith.subf %44, %46 : vector<8x128xf32>
    %48 = arith.mulf %1, %47 : vector<8x128xf32>
    %cst_21 = arith.constant dense<0.000000e+00> : vector<8xf32>
    %49 = vector.multi_reduction <add>, %48, %cst_21 [1] : vector<8x128xf32> to vector<8xf32>
    %50 = vector.shape_cast %49 : vector<8xf32> to vector<8x1xf32>
    %51 = arith.mulf %42, %47 : vector<8x128xf32>
    %cst_22 = arith.constant 0.000000e+00 : f32
    %52 = vector.broadcast %cst_22 : f32 to vector<8x128xf32>
    %53 = arith.select %24, %51, %52 : vector<8x128xi1>, vector<8x128xf32>
    %cst_23 = arith.constant dense<0.000000e+00> : vector<8xf32>
    %54 = vector.multi_reduction <add>, %53, %cst_23 [1] : vector<8x128xf32> to vector<8xf32>
    %55 = vector.shape_cast %54 : vector<8xf32> to vector<8x1xf32>
    %cst_24 = arith.constant 0.000000e+00 : f32
    %56 = vector.broadcast %cst_24 : f32 to vector<8x1xf32>
    %57 = arith.subf %56, %55 : vector<8x1xf32>
    %c3_i32_25 = arith.constant 3 : i32
    %58 = vector.broadcast %c3_i32_25 : i32 to vector<8x128xi32>
    %59 = arith.cmpi eq, %22, %58 : vector<8x128xi32>
    %cst_26 = arith.constant 0.000000e+00 : f32
    %60 = vector.broadcast %cst_26 : f32 to vector<8x128xf32>
    %61 = arith.select %59, %21, %60 : vector<8x128xi1>, vector<8x128xf32>
    %cst_27 = arith.constant dense<0.000000e+00> : vector<8xf32>
    %62 = vector.multi_reduction <add>, %61, %cst_27 [1] : vector<8x128xf32> to vector<8xf32>
    %63 = vector.shape_cast %62 : vector<8xf32> to vector<8x1xf32>
    %c0_28 = arith.constant 0 : index
    %c512 = arith.constant 512 : index
    %64 = vector.load %arg2[%c0_28, %c512] : memref<128x896xf32, #tpu.memory_space<vmem>>, vector<128x128xf32>
    %cst_29 = arith.constant dense<0.000000e+00> : vector<8x128xf32>
    %65 = tpu.matmul %42, %64, %cst_29 {dimension_numbers = #tpu.dot_dimension_numbers<[1], [0], [0], [1], [0, 0, 1, 1], [], []>} : vector<8x128xf32>, vector<128x128xf32>, vector<8x128xf32> -> vector<8x128xf32>
    %c0_30 = arith.constant 0 : index
    %c512_31 = arith.constant 512 : index
    %66 = vector.load %arg3[%c0_30, %c512_31] : memref<1x1024xf32, #tpu.memory_space<vmem>>, vector<1x128xf32>
    %67 = vector.broadcast %66 : vector<1x128xf32> to vector<8x128xf32>
    %68 = arith.addf %65, %67 : vector<8x128xf32>
    %69 = arith.addf %10, %68 : vector<8x128xf32>
    %70 = math.tanh %69 : vector<8x128xf32>
    %c0_32 = arith.constant 0 : index
    %c640 = arith.constant 640 : index
    %71 = vector.load %arg2[%c0_32, %c640] : memref<128x896xf32, #tpu.memory_space<vmem>>, vector<128x128xf32>
    %cst_33 = arith.constant dense<0.000000e+00> : vector<8x128xf32>
    %72 = tpu.matmul %70, %71, %cst_33 {dimension_numbers = #tpu.dot_dimension_numbers<[1], [0], [0], [1], [0, 0, 1, 1], [], []>} : vector<8x128xf32>, vector<128x128xf32>, vector<8x128xf32> -> vector<8x128xf32>
    %c0_34 = arith.constant 0 : index
    %c640_35 = arith.constant 640 : index
    %73 = vector.load %arg3[%c0_34, %c640_35] : memref<1x1024xf32, #tpu.memory_space<vmem>>, vector<1x128xf32>
    %74 = vector.broadcast %73 : vector<1x128xf32> to vector<8x128xf32>
    %75 = arith.addf %72, %74 : vector<8x128xf32>
    %76 = math.tanh %75 : vector<8x128xf32>
    %c0_36 = arith.constant 0 : index
    %c768 = arith.constant 768 : index
    %77 = vector.load %arg2[%c0_36, %c768] : memref<128x896xf32, #tpu.memory_space<vmem>>, vector<128x128xf32>
    %cst_37 = arith.constant dense<0.000000e+00> : vector<8x128xf32>
    %78 = tpu.matmul %76, %77, %cst_37 {dimension_numbers = #tpu.dot_dimension_numbers<[1], [0], [0], [1], [0, 0, 1, 1], [], []>} : vector<8x128xf32>, vector<128x128xf32>, vector<8x128xf32> -> vector<8x128xf32>
    %c0_38 = arith.constant 0 : index
    %c768_39 = arith.constant 768 : index
    %79 = vector.load %arg3[%c0_38, %c768_39] : memref<1x1024xf32, #tpu.memory_space<vmem>>, vector<1x128xf32>
    %80 = vector.broadcast %79 : vector<1x128xf32> to vector<8x128xf32>
    %81 = arith.addf %78, %80 : vector<8x128xf32>
    %82 = math.tanh %81 : vector<8x128xf32>
    %c0_40 = arith.constant 0 : index
    %c896 = arith.constant 896 : index
    %83 = vector.load %arg3[%c0_40, %c896] : memref<1x1024xf32, #tpu.memory_space<vmem>>, vector<1x128xf32>
    %84 = arith.subf %2, %82 : vector<8x128xf32>
    %85 = arith.mulf %84, %84 : vector<8x128xf32>
    %86 = vector.broadcast %83 : vector<1x128xf32> to vector<8x128xf32>
    %87 = arith.mulf %85, %86 : vector<8x128xf32>
    %cst_41 = arith.constant dense<0.000000e+00> : vector<8xf32>
    %88 = vector.multi_reduction <add>, %87, %cst_41 [1] : vector<8x128xf32> to vector<8xf32>
    %89 = vector.shape_cast %88 : vector<8xf32> to vector<8x1xf32>
    %90 = arith.addf %42, %82 : vector<8x128xf32>
    %c16_i32 = arith.constant 16 : i32
    %91 = vector.broadcast %c16_i32 : i32 to vector<8x128xi32>
    %92 = arith.cmpi eq, %22, %91 : vector<8x128xi32>
    %cst_42 = arith.constant 0.000000e+00 : f32
    %93 = vector.shape_cast %50 : vector<8x1xf32> to vector<8x1xf32>
    %94 = vector.broadcast %93 : vector<8x1xf32> to vector<8x128xf32>
    %95 = vector.broadcast %cst_42 : f32 to vector<8x128xf32>
    %96 = arith.select %92, %94, %95 : vector<8x128xi1>, vector<8x128xf32>
    %97 = arith.addf %90, %96 : vector<8x128xf32>
    %c17_i32 = arith.constant 17 : i32
    %98 = vector.broadcast %c17_i32 : i32 to vector<8x128xi32>
    %99 = arith.cmpi eq, %22, %98 : vector<8x128xi32>
    %cst_43 = arith.constant 0.000000e+00 : f32
    %100 = vector.shape_cast %89 : vector<8x1xf32> to vector<8x1xf32>
    %101 = vector.broadcast %100 : vector<8x1xf32> to vector<8x128xf32>
    %102 = vector.broadcast %cst_43 : f32 to vector<8x128xf32>
    %103 = arith.select %99, %101, %102 : vector<8x128xi1>, vector<8x128xf32>
    %104 = arith.addf %97, %103 : vector<8x128xf32>
    %c18_i32 = arith.constant 18 : i32
    %105 = vector.broadcast %c18_i32 : i32 to vector<8x128xi32>
    %106 = arith.cmpi eq, %22, %105 : vector<8x128xi32>
    %cst_44 = arith.constant 0.000000e+00 : f32
    %107 = vector.shape_cast %63 : vector<8x1xf32> to vector<8x1xf32>
    %108 = vector.broadcast %107 : vector<8x1xf32> to vector<8x128xf32>
    %109 = vector.broadcast %cst_44 : f32 to vector<8x128xf32>
    %110 = arith.select %106, %108, %109 : vector<8x128xi1>, vector<8x128xf32>
    %111 = arith.addf %104, %110 : vector<8x128xf32>
    %c19_i32 = arith.constant 19 : i32
    %112 = vector.broadcast %c19_i32 : i32 to vector<8x128xi32>
    %113 = arith.cmpi eq, %22, %112 : vector<8x128xi32>
    %cst_45 = arith.constant 0.000000e+00 : f32
    %114 = vector.shape_cast %57 : vector<8x1xf32> to vector<8x1xf32>
    %115 = vector.broadcast %114 : vector<8x1xf32> to vector<8x128xf32>
    %116 = vector.broadcast %cst_45 : f32 to vector<8x128xf32>
    %117 = arith.select %113, %115, %116 : vector<8x128xi1>, vector<8x128xf32>
    %118 = arith.addf %111, %117 : vector<8x128xf32>
    %c0_46 = arith.constant 0 : index
    %c0_47 = arith.constant 0 : index
    %119 = vector.load %arg4[%c0_46, %c0_47] : memref<8x128xf32, #tpu.memory_space<vmem>>, vector<8x128xf32>
    tpu.vector_store %arg4[%c0_46, %c0_47], %118 {strides = array<i32>} : memref<8x128xf32, #tpu.memory_space<vmem>>, vector<8x128xf32>,
    return
  }
  func.func @transform_0(%arg0: i32) -> (i32, i32) {
    %c0_i32 = arith.constant 0 : i32
    %c0_i32_0 = arith.constant 0 : i32
    return %arg0, %c0_i32 : i32, i32
  }
  func.func @transform_1(%arg0: i32) -> (i32, i32) {
    %c0_i32 = arith.constant 0 : i32
    %c0_i32_0 = arith.constant 0 : i32
    %c0_i32_1 = arith.constant 0 : i32
    return %c0_i32, %c0_i32_0 : i32, i32
  }
  func.func @transform_2(%arg0: i32) -> (i32, i32) {
    %c0_i32 = arith.constant 0 : i32
    %c0_i32_0 = arith.constant 0 : i32
    %c0_i32_1 = arith.constant 0 : i32
    return %c0_i32, %c0_i32_0 : i32, i32
  }
  func.func @transform_3(%arg0: i32) -> (i32, i32) {
    %c0_i32 = arith.constant 0 : i32
    %c0_i32_0 = arith.constant 0 : i32
    return %arg0, %c0_i32 : i32, i32
  }
}

</mosaic_0001>

<llo_original>
// kernel: tpu_custom_call.1
$region0: #{tpu_custom_call.1}
  #allocation0 [shape = 'u32[]', space=smem, size = 0x4, offset = 0x4, fixed_abs, tag = 'smem constant byte address 0x4 - core index']
  #allocation1 [shape = 'u32[144,128]{1,0:T(1,128)}', space=vmem, size = 0x12000, scoped, tag = 'internal scratch']
  %s0 = inlined_call_operand.hbm [shape: f32[8,384], index: 0, kind: input, shape index: {}]
  %s1 = inlined_call_operand.hbm [shape: f32[128,896], index: 1, kind: input, shape index: {}]
  %s2 = inlined_call_operand.hbm [shape: f32[1,1024], index: 2, kind: input, shape index: {}]
  %s3 = inlined_call_operand.hbm [shape: f32[8,128], index: 3, kind: output, shape index: {}]
  %s4 = sld [smem:[#allocation0]]
  $region34: #{tpu_custom_call.1} parent=0
    _
  %s6 = ssub.s32 1, %s4
  %s7 = scalar_select 0, %s6, %s4
  $region1: #{tpu_custom_call.1} parent=0
    #allocation2 [shape = 'u8[12288]{0}', space=vmem, size = 0x3000, scoped, tag = 'input window, operand 0, single buffered']
    #allocation3 [shape = 's32[1]{0}', space=sflag, size = 0x4, scoped, tag = 'scoped memory for tpu_custom_call.1']
    #allocation4 [shape = 's32[1]{0}', space=sflag, size = 0x4, scoped, tag = 'scoped memory for tpu_custom_call.1']
    #allocation5 [shape = 'u8[458752]{0}', space=vmem, size = 0x70000, scoped, tag = 'input window, operand 1, single buffered']
    #allocation6 [shape = 's32[1]{0}', space=sflag, size = 0x4, scoped, tag = 'scoped memory for tpu_custom_call.1']
    #allocation7 [shape = 'u8[4096]{0}', space=vmem, size = 0x1000, scoped, tag = 'input window, operand 2, single buffered']
    #allocation8 [shape = 'u8[4096]{0}', space=vmem, size = 0x1000, scoped, tag = 'output window, operand 0, single buffered']
    %8 = vsyncpa [#allocation3], 0
    %9 = vsyncpa [#allocation6], 0
    %10 = vsyncpa [#allocation4], 0
    // Predicated region
    $region2: #{tpu_custom_call.1} parent=1 // pred_check
      _
    $region3: #{tpu_custom_call.1} parent=1 // pred_check_branch
      %12 = sbr.rel (0) target = $region5
    $region4: #{tpu_custom_call.1} parent=1 // pred_region
      %s14 = ssub.s32 384, 384
      %15 = vsyncadd [#allocation3], %s14
      %s17 = sshll.u32 [#allocation2], 4
      %s18 = int_to_ptr.vmem [resolvable:$true] %s17
      %20 = dma.hbm_to_vmem [thread:$0]  %s0, 384, %s18, [#allocation3]
    $region5: #{tpu_custom_call.1} parent=1 // pred_fallthru
      _
    // Predicated region
    $region6: #{tpu_custom_call.1} parent=1 // pred_check
      _
    $region7: #{tpu_custom_call.1} parent=1 // pred_check_branch
      %22 = sbr.rel (0) target = $region9
    $region8: #{tpu_custom_call.1} parent=1 // pred_region
      %s24 = ssub.s32 14336, 14336
      %25 = vsyncadd [#allocation6], %s24
      %s26 = sshll.u32 [#allocation5], 4
      %s27 = int_to_ptr.vmem [resolvable:$true] %s26
      %32 = dma.hbm_to_vmem [thread:$0]  %s1, 14336, %s27, [#allocation6], 896, 896, 56
    $region9: #{tpu_custom_call.1} parent=1 // pred_fallthru
      _
    // Predicated region
    $region10: #{tpu_custom_call.1} parent=1 // pred_check
      _
    $region11: #{tpu_custom_call.1} parent=1 // pred_check_branch
      %34 = sbr.rel (0) target = $region13
    $region12: #{tpu_custom_call.1} parent=1 // pred_region
      %s36 = ssub.s32 128, 128
      %37 = vsyncadd [#allocation6], %s36
      %s39 = sshll.u32 [#allocation7], 4
      %s40 = int_to_ptr.vmem [resolvable:$true] %s39
      %42 = dma.hbm_to_vmem [thread:$0]  %s2, 128, %s40, [#allocation6]
    $region13: #{tpu_custom_call.1} parent=1 // pred_fallthru
      _
    // Predicated region
    $region14: #{tpu_custom_call.1} parent=1 // pred_check
      _
    $region15: #{tpu_custom_call.1} parent=1 // pred_check_branch
      %44 = sbr.rel (0) target = $region17
    $region16: #{tpu_custom_call.1} parent=1 // pred_region
      %45 = dma.done [#allocation3], 384
    $region17: #{tpu_custom_call.1} parent=1 // pred_fallthru
      _
    // Predicated region
    $region18: #{tpu_custom_call.1} parent=1 // pred_check
      _
    $region19: #{tpu_custom_call.1} parent=1 // pred_check_branch
      %47 = sbr.rel (0) target = $region21
    $region20: #{tpu_custom_call.1} parent=1 // pred_region
      %48 = dma.done [#allocation6], 14336
    $region21: #{tpu_custom_call.1} parent=1 // pred_fallthru
      _
    // Predicated region
    $region22: #{tpu_custom_call.1} parent=1 // pred_check
      _
    $region23: #{tpu_custom_call.1} parent=1 // pred_check_branch
      %50 = sbr.rel (0) target = $region25
    $region24: #{tpu_custom_call.1} parent=1 // pred_region
      %51 = dma.done [#allocation6], 128
    $region25: #{tpu_custom_call.1} parent=1 // pred_fallthru
      _
    %v52 = vld [vmem:[#allocation2] sm:$0xff]
    %v53 = vld [vmem:[#allocation2 + $0x8] sm:$0xff]
    %v54 = vld [vmem:[#allocation2 + $0x10] sm:$0xff]
    %v55 = vld [vmem:[#allocation5] sm:$0xff]
    %v56 = vld [vmem:[#allocation5 + $0x8] sm:$0xff]
    %v57 = vld [vmem:[#allocation5 + $0x38] sm:$0xff]
    %v58 = vld [vmem:[#allocation5 + $0x40] sm:$0xff]
    %v59 = vld [vmem:[#allocation5 + $0x70] sm:$0xff]
    %v60 = vld [vmem:[#allocation5 + $0x78] sm:$0xff]
    %v61 = vld [vmem:[#allocation5 + $0xa8] sm:$0xff]
    %v62 = vld [vmem:[#allocation5 + $0xb0] sm:$0xff]
    %v63 = vld [vmem:[#allocation5 + $0xe0] sm:$0xff]
    %v64 = vld [vmem:[#allocation5 + $0xe8] sm:$0xff]
    %v65 = vld [vmem:[#allocation5 + $0x118] sm:$0xff]
    %v66 = vld [vmem:[#allocation5 + $0x120] sm:$0xff]
    %v67 = vld [vmem:[#allocation5 + $0x150] sm:$0xff]
    %v68 = vld [vmem:[#allocation5 + $0x158] sm:$0xff]
    %v69 = vld [vmem:[#allocation5 + $0x188] sm:$0xff]
    %v70 = vld [vmem:[#allocation5 + $0x190] sm:$0xff]
    %v71 = vld [vmem:[#allocation5 + $0x1c0] sm:$0xff]
    %v72 = vld [vmem:[#allocation5 + $0x1c8] sm:$0xff]
    %v73 = vld [vmem:[#allocation5 + $0x1f8] sm:$0xff]
    %v74 = vld [vmem:[#allocation5 + $0x200] sm:$0xff]
    %v75 = vld [vmem:[#allocation5 + $0x230] sm:$0xff]
    %v76 = vld [vmem:[#allocation5 + $0x238] sm:$0xff]
    %v77 = vld [vmem:[#allocation5 + $0x268] sm:$0xff]
    %v78 = vld [vmem:[#allocation5 + $0x270] sm:$0xff]
    %v79 = vld [vmem:[#allocation5 + $0x2a0] sm:$0xff]
    %v80 = vld [vmem:[#allocation5 + $0x2a8] sm:$0xff]
    %v81 = vld [vmem:[#allocation5 + $0x2d8] sm:$0xff]
    %v82 = vld [vmem:[#allocation5 + $0x2e0] sm:$0xff]
    %v83 = vld [vmem:[#allocation5 + $0x310] sm:$0xff]
    %v84 = vld [vmem:[#allocation5 + $0x318] sm:$0xff]
    %v85 = vld [vmem:[#allocation5 + $0x348] sm:$0xff]
    %v86 = vld [vmem:[#allocation5 + $0x350] sm:$0xff]
    %v87 = vld [vmem:[#allocation7] sm:$0x3]
    %v89 = vlaneseq
    %v90 = vshrl.u32 %v89, 7
    %v91 = vsub.s32 0, %v90
    %v92 = vrot.slane %v87, %v91
    %v93 = vlaneseq
    %v94 = vshrl.u32 %v93, 7
    %v95 = vsub.s32 1, %v94
    %v96 = vrot.slane %v87, %v95
    %99 = vmatprep.subr.mxu0 %v56
    %100 = vmatpush1.msra.mxu0 %v55
    %101 = vmatprep.subr.mxu0 %v58
    %102 = vmatpush1.msra.mxu0 %v57
    %103 = vmatprep.subr.mxu0 %v60
    %104 = vmatpush1.msra.mxu0 %v59
    %105 = vmatprep.subr.mxu0 %v62
    %106 = vmatpush1.msra.mxu0 %v61
    %107 = vmatprep.subr.mxu0 %v64
    %108 = vmatpush1.msra.mxu0 %v63
    %109 = vmatprep.subr.mxu0 %v66
    %110 = vmatpush1.msra.mxu0 %v65
    %111 = vmatprep.subr.mxu0 %v68
    %112 = vmatpush1.msra.mxu0 %v67
    %113 = vmatprep.subr.mxu0 %v70
    %114 = vmatpush1.msra.mxu0 %v69
    %115 = vmatprep.subr.mxu0 %v72
    %116 = vmatpush1.msra.mxu0 %v71
    %117 = vmatprep.subr.mxu0 %v74
    %118 = vmatpush1.msra.mxu0 %v73
    %119 = vmatprep.subr.mxu0 %v76
    %120 = vmatpush1.msra.mxu0 %v75
    %121 = vmatprep.subr.mxu0 %v78
    %122 = vmatpush1.msra.mxu0 %v77
    %123 = vmatprep.subr.mxu0 %v80
    %124 = vmatpush1.msra.mxu0 %v79
    %125 = vmatprep.subr.mxu0 %v82
    %126 = vmatpush1.msra.mxu0 %v81
    %127 = vmatprep.subr.mxu0 %v84
    %128 = vmatpush1.msra.mxu0 %v83
    %129 = vmatprep.subr.mxu0 %v86
    %130 = vmatpush1.msra.mxu0 %v85
    %131 = vmatprep.subr.mxu0 0.0
    %132 = vmatpush1.msra.mxu0 0.0
    %133 = vmatprep.subr.mxu0 0.0
    %134 = vmatpush1.msra.mxu0 0.0
    %135 = vmatprep.subr.mxu0 0.0
    %136 = vmatpush1.msra.mxu0 0.0
    %137 = vmatprep.subr.mxu0 0.0
    %138 = vmatpush1.msra.mxu0 0.0
    %139 = vmatprep.subr.mxu0 0.0
    %140 = vmatpush1.msra.mxu0 0.0
    %141 = vmatprep.subr.mxu0 0.0
    %142 = vmatpush1.msra.mxu0 0.0
    %143 = vmatprep.subr.mxu0 0.0
    %144 = vmatpush1.msra.mxu0 0.0
    %145 = vmatprep.subr.mxu0 0.0
    %146 = vmatpush1.msra.mxu0 0.0
    %147 = vmatprep.subr.mxu0 0.0
    %148 = vmatpush1.msra.mxu0 0.0
    %149 = vmatprep.subr.mxu0 0.0
    %150 = vmatpush1.msra.mxu0 0.0
    %151 = vmatprep.subr.mxu0 0.0
    %152 = vmatpush1.msra.mxu0 0.0
    %153 = vmatprep.subr.mxu0 0.0
    %154 = vmatpush1.msra.mxu0 0.0
    %155 = vmatprep.subr.mxu0 0.0
    %156 = vmatpush1.msra.mxu0 0.0
    %157 = vmatprep.subr.mxu0 0.0
    %158 = vmatpush1.msra.mxu0 0.0
    %159 = vmatprep.subr.mxu0 0.0
    %160 = vmatpush1.msra.mxu0 0.0
    %161 = vmatprep.subr.mxu0 0.0
    %162 = vmatpush1.msra.mxu0 0.0
    %163 = vmatprep.mubr.f32.mxu0 0.0
    %164 = vmatmul.mubr.f32.gmra.mrb[0].mxu0 %v52
    %v165 = vpop.f32.mrb[0].mxu0
    %v166 = vadd.f32 %v92, %v165
    %v167 = vpop.f32.mrb[0].mxu0
    %v168 = vadd.f32 %v96, %v167
    %169 = vdwg.mxu0
    %v170 = vtanh.pop %v166
    %v171 = vld [vmem:[#allocation5 + $0x10] sm:$0xff]
    %v172 = vld [vmem:[#allocation5 + $0x48] sm:$0xff]
    %v173 = vld [vmem:[#allocation5 + $0x80] sm:$0xff]
    %v174 = vld [vmem:[#allocation5 + $0xb8] sm:$0xff]
    %v175 = vld [vmem:[#allocation5 + $0xf0] sm:$0xff]
    %v176 = vld [vmem:[#allocation5 + $0x128] sm:$0xff]
    %v177 = vld [vmem:[#allocation5 + $0x160] sm:$0xff]
    %v178 = vld [vmem:[#allocation5 + $0x198] sm:$0xff]
    %v179 = vld [vmem:[#allocation5 + $0x1d0] sm:$0xff]
    %v180 = vld [vmem:[#allocation5 + $0x208] sm:$0xff]
    %v181 = vld [vmem:[#allocation5 + $0x240] sm:$0xff]
    %v182 = vld [vmem:[#allocation5 + $0x278] sm:$0xff]
    %v183 = vld [vmem:[#allocation5 + $0x2b0] sm:$0xff]
    %v184 = vld [vmem:[#allocation5 + $0x2e8] sm:$0xff]
    %v185 = vld [vmem:[#allocation5 + $0x320] sm:$0xff]
    %v186 = vld [vmem:[#allocation5 + $0x358] sm:$0xff]
    %v187 = vld [vmem:[#allocation7 + $0x2] sm:$0x1]
    %v189 = vlaneseq
    %v190 = vshrl.u32 %v189, 7
    %v191 = vsub.s32 0, %v190
    %v192 = vrot.slane %v187, %v191
    %194 = vmatprep.subr.mxu0 0.0
    %195 = vmatpush1.msra.mxu0 %v171
    %196 = vmatprep.subr.mxu0 0.0
    %197 = vmatpush1.msra.mxu0 %v172
    %198 = vmatprep.subr.mxu0 0.0
    %199 = vmatpush1.msra.mxu0 %v173
    %200 = vmatprep.subr.mxu0 0.0
    %201 = vmatpush1.msra.mxu0 %v174
    %202 = vmatprep.subr.mxu0 0.0
    %203 = vmatpush1.msra.mxu0 %v175
    %204 = vmatprep.subr.mxu0 0.0
    %205 = vmatpush1.msra.mxu0 %v176
    %206 = vmatprep.subr.mxu0 0.0
    %207 = vmatpush1.msra.mxu0 %v177
    %208 = vmatprep.subr.mxu0 0.0
    %209 = vmatpush1.msra.mxu0 %v178
    %210 = vmatprep.subr.mxu0 0.0
    %211 = vmatpush1.msra.mxu0 %v179
    %212 = vmatprep.subr.mxu0 0.0
    %213 = vmatpush1.msra.mxu0 %v180
    %214 = vmatprep.subr.mxu0 0.0
    %215 = vmatpush1.msra.mxu0 %v181
    %216 = vmatprep.subr.mxu0 0.0
    %217 = vmatpush1.msra.mxu0 %v182
    %218 = vmatprep.subr.mxu0 0.0
    %219 = vmatpush1.msra.mxu0 %v183
    %220 = vmatprep.subr.mxu0 0.0
    %221 = vmatpush1.msra.mxu0 %v184
    %222 = vmatprep.subr.mxu0 0.0
    %223 = vmatpush1.msra.mxu0 %v185
    %224 = vmatprep.subr.mxu0 0.0
    %225 = vmatpush1.msra.mxu0 %v186
    %226 = vmatprep.subr.mxu0 0.0
    %227 = vmatpush1.msra.mxu0 0.0
    %228 = vmatprep.subr.mxu0 0.0
    %229 = vmatpush1.msra.mxu0 0.0
    %230 = vmatprep.subr.mxu0 0.0
    %231 = vmatpush1.msra.mxu0 0.0
    %232 = vmatprep.subr.mxu0 0.0
    %233 = vmatpush1.msra.mxu0 0.0
    %234 = vmatprep.subr.mxu0 0.0
    %235 = vmatpush1.msra.mxu0 0.0
    %236 = vmatprep.subr.mxu0 0.0
    %237 = vmatpush1.msra.mxu0 0.0
    %238 = vmatprep.subr.mxu0 0.0
    %239 = vmatpush1.msra.mxu0 0.0
    %240 = vmatprep.subr.mxu0 0.0
    %241 = vmatpush1.msra.mxu0 0.0
    %242 = vmatprep.subr.mxu0 0.0
    %243 = vmatpush1.msra.mxu0 0.0
    %244 = vmatprep.subr.mxu0 0.0
    %245 = vmatpush1.msra.mxu0 0.0
    %246 = vmatprep.subr.mxu0 0.0
    %247 = vmatpush1.msra.mxu0 0.0
    %248 = vmatprep.subr.mxu0 0.0
    %249 = vmatpush1.msra.mxu0 0.0
    %250 = vmatprep.subr.mxu0 0.0
    %251 = vmatpush1.msra.mxu0 0.0
    %252 = vmatprep.subr.mxu0 0.0
    %253 = vmatpush1.msra.mxu0 0.0
    %254 = vmatprep.subr.mxu0 0.0
    %255 = vmatpush1.msra.mxu0 0.0
    %256 = vmatprep.subr.mxu0 0.0
    %257 = vmatpush1.msra.mxu0 0.0
    %258 = vmatprep.mubr.f32.mxu0 0.0
    %259 = vmatmul.mubr.f32.gmra.mrb[0].mxu0 %v170
    %v260 = vpop.f32.mrb[0].mxu0
    %v261 = vadd.f32 %v192, %v260
    %v262 = vpop.f32.mrb[0].mxu0
    %263 = vdwg.mxu0
    %v264 = vtanh.pop %v261
    %v265 = vld [vmem:[#allocation5 + $0x18] sm:$0xff]
    %v266 = vld [vmem:[#allocation5 + $0x50] sm:$0xff]
    %v267 = vld [vmem:[#allocation5 + $0x88] sm:$0xff]
    %v268 = vld [vmem:[#allocation5 + $0xc0] sm:$0xff]
    %v269 = vld [vmem:[#allocation5 + $0xf8] sm:$0xff]
    %v270 = vld [vmem:[#allocation5 + $0x130] sm:$0xff]
    %v271 = vld [vmem:[#allocation5 + $0x168] sm:$0xff]
    %v272 = vld [vmem:[#allocation5 + $0x1a0] sm:$0xff]
    %v273 = vld [vmem:[#allocation5 + $0x1d8] sm:$0xff]
    %v274 = vld [vmem:[#allocation5 + $0x210] sm:$0xff]
    %v275 = vld [vmem:[#allocation5 + $0x248] sm:$0xff]
    %v276 = vld [vmem:[#allocation5 + $0x280] sm:$0xff]
    %v277 = vld [vmem:[#allocation5 + $0x2b8] sm:$0xff]
    %v278 = vld [vmem:[#allocation5 + $0x2f0] sm:$0xff]
    %v279 = vld [vmem:[#allocation5 + $0x328] sm:$0xff]
    %v280 = vld [vmem:[#allocation5 + $0x360] sm:$0xff]
    %v281 = vld [vmem:[#allocation7 + $0x3] sm:$0x1]
    %v283 = vlaneseq
    %v284 = vshrl.u32 %v283, 7
    %v285 = vsub.s32 0, %v284
    %v286 = vrot.slane %v281, %v285
    %288 = vmatprep.subr.mxu0 0.0
    %289 = vmatpush1.msra.mxu0 %v265
    %290 = vmatprep.subr.mxu0 0.0
    %291 = vmatpush1.msra.mxu0 %v266
    %292 = vmatprep.subr.mxu0 0.0
    %293 = vmatpush1.msra.mxu0 %v267
    %294 = vmatprep.subr.mxu0 0.0
    %295 = vmatpush1.msra.mxu0 %v268
    %296 = vmatprep.subr.mxu0 0.0
    %297 = vmatpush1.msra.mxu0 %v269
    %298 = vmatprep.subr.mxu0 0.0
    %299 = vmatpush1.msra.mxu0 %v270
    %300 = vmatprep.subr.mxu0 0.0
    %301 = vmatpush1.msra.mxu0 %v271
    %302 = vmatprep.subr.mxu0 0.0
    %303 = vmatpush1.msra.mxu0 %v272
    %304 = vmatprep.subr.mxu0 0.0
    %305 = vmatpush1.msra.mxu0 %v273
    %306 = vmatprep.subr.mxu0 0.0
    %307 = vmatpush1.msra.mxu0 %v274
    %308 = vmatprep.subr.mxu0 0.0
    %309 = vmatpush1.msra.mxu0 %v275
    %310 = vmatprep.subr.mxu0 0.0
    %311 = vmatpush1.msra.mxu0 %v276
    %312 = vmatprep.subr.mxu0 0.0
    %313 = vmatpush1.msra.mxu0 %v277
    %314 = vmatprep.subr.mxu0 0.0
    %315 = vmatpush1.msra.mxu0 %v278
    %316 = vmatprep.subr.mxu0 0.0
    %317 = vmatpush1.msra.mxu0 %v279
    %318 = vmatprep.subr.mxu0 0.0
    %319 = vmatpush1.msra.mxu0 %v280
    %320 = vmatprep.subr.mxu0 0.0
    %321 = vmatpush1.msra.mxu0 0.0
    %322 = vmatprep.subr.mxu0 0.0
    %323 = vmatpush1.msra.mxu0 0.0
    %324 = vmatprep.subr.mxu0 0.0
    %325 = vmatpush1.msra.mxu0 0.0
    %326 = vmatprep.subr.mxu0 0.0
    %327 = vmatpush1.msra.mxu0 0.0
    %328 = vmatprep.subr.mxu0 0.0
    %329 = vmatpush1.msra.mxu0 0.0
    %330 = vmatprep.subr.mxu0 0.0
    %331 = vmatpush1.msra.mxu0 0.0
    %332 = vmatprep.subr.mxu0 0.0
    %333 = vmatpush1.msra.mxu0 0.0
    %334 = vmatprep.subr.mxu0 0.0
    %335 = vmatpush1.msra.mxu0 0.0
    %336 = vmatprep.subr.mxu0 0.0
    %337 = vmatpush1.msra.mxu0 0.0
    %338 = vmatprep.subr.mxu0 0.0
    %339 = vmatpush1.msra.mxu0 0.0
    %340 = vmatprep.subr.mxu0 0.0
    %341 = vmatpush1.msra.mxu0 0.0
    %342 = vmatprep.subr.mxu0 0.0
    %343 = vmatpush1.msra.mxu0 0.0
    %344 = vmatprep.subr.mxu0 0.0
    %345 = vmatpush1.msra.mxu0 0.0
    %346 = vmatprep.subr.mxu0 0.0
    %347 = vmatpush1.msra.mxu0 0.0
    %348 = vmatprep.subr.mxu0 0.0
    %349 = vmatpush1.msra.mxu0 0.0
    %350 = vmatprep.subr.mxu0 0.0
    %351 = vmatpush1.msra.mxu0 0.0
    %352 = vmatprep.mubr.f32.mxu0 0.0
    %353 = vmatmul.mubr.f32.gmra.mrb[0].mxu0 %v264
    %v354 = vpop.f32.mrb[0].mxu0
    %v355 = vadd.f32 %v286, %v354
    %v356 = vpop.f32.mrb[0].mxu0
    %357 = vdwg.mxu0
    %v358 = vlaneseq
    %v359 = vand.u32 %v358, 127
    %vm360 = vcmp.lt.s32.totalorder %v359, 3
    %v361 = vsel %vm360, %v355, -1e+30
    %362 = vmax.xlane.f32.xlu0 %v361
    %v363 = vpop.xlane.xlu0 %362
    %v364 = vsub.f32 %v361, %v363
    %v365 = vmul.f32 %v364, 1.442695
    %v366 = vpow.pop %v365
    %v367 = vsel %vm360, %v366, 0.0
    %368 = vadd.xlane.f32.xlu0 %v367
    %v369 = vpop.xlane.xlu0 %368
    %v370 = vrcp.pop %v369
    %v371 = vmul.f32 %v369, %v370
    %v372 = vsub.f32 2.0, %v371
    %v373 = vmul.f32 %v370, %v372
    %v374 = vmul.f32 %v367, %v373
    %v375 = vlog2.pop %v369
    %v376 = vmul.f32 %v375, 0.6931472
    %v377 = vsub.f32 %v364, %v376
    %v378 = vmul.f32 %v53, %v377
    %379 = vadd.xlane.f32.xlu0 %v378
    %v380 = vpop.xlane.xlu0 %379
    %v381 = vmul.f32 %v374, %v377
    %v382 = vsel %vm360, %v381, 0.0
    %383 = vadd.xlane.f32.xlu0 %v382
    %v384 = vpop.xlane.xlu0 %383
    %v385 = vsub.f32 0.0, %v384
    %vm386 = vcmp.eq.s32.totalorder %v359, 3
    %v387 = vsel %vm386, %v355, 0.0
    %388 = vadd.xlane.f32.xlu0 %v387
    %v389 = vpop.xlane.xlu0 %388
    %v390 = vld [vmem:[#allocation5 + $0x20] sm:$0xff]
    %v391 = vld [vmem:[#allocation5 + $0x58] sm:$0xff]
    %v392 = vld [vmem:[#allocation5 + $0x90] sm:$0xff]
    %v393 = vld [vmem:[#allocation5 + $0xc8] sm:$0xff]
    %v394 = vld [vmem:[#allocation5 + $0x100] sm:$0xff]
    %v395 = vld [vmem:[#allocation5 + $0x138] sm:$0xff]
    %v396 = vld [vmem:[#allocation5 + $0x170] sm:$0xff]
    %v397 = vld [vmem:[#allocation5 + $0x1a8] sm:$0xff]
    %v398 = vld [vmem:[#allocation5 + $0x1e0] sm:$0xff]
    %v399 = vld [vmem:[#allocation5 + $0x218] sm:$0xff]
    %v400 = vld [vmem:[#allocation5 + $0x250] sm:$0xff]
    %v401 = vld [vmem:[#allocation5 + $0x288] sm:$0xff]
    %v402 = vld [vmem:[#allocation5 + $0x2c0] sm:$0xff]
    %v403 = vld [vmem:[#allocation5 + $0x2f8] sm:$0xff]
    %v404 = vld [vmem:[#allocation5 + $0x330] sm:$0xff]
    %v405 = vld [vmem:[#allocation5 + $0x368] sm:$0xff]
    %v406 = vld [vmem:[#allocation7 + $0x4] sm:$0x1]
    %v408 = vlaneseq
    %v409 = vshrl.u32 %v408, 7
    %v410 = vsub.s32 0, %v409
    %v411 = vrot.slane %v406, %v410
    %413 = vmatprep.subr.mxu0 0.0
    %414 = vmatpush1.msra.mxu0 %v390
    %415 = vmatprep.subr.mxu0 0.0
    %416 = vmatpush1.msra.mxu0 %v391
    %417 = vmatprep.subr.mxu0 0.0
    %418 = vmatpush1.msra.mxu0 %v392
    %419 = vmatprep.subr.mxu0 0.0
    %420 = vmatpush1.msra.mxu0 %v393
    %421 = vmatprep.subr.mxu0 0.0
    %422 = vmatpush1.msra.mxu0 %v394
    %423 = vmatprep.subr.mxu0 0.0
    %424 = vmatpush1.msra.mxu0 %v395
    %425 = vmatprep.subr.mxu0 0.0
    %426 = vmatpush1.msra.mxu0 %v396
    %427 = vmatprep.subr.mxu0 0.0
    %428 = vmatpush1.msra.mxu0 %v397
    %429 = vmatprep.subr.mxu0 0.0
    %430 = vmatpush1.msra.mxu0 %v398
    %431 = vmatprep.subr.mxu0 0.0
    %432 = vmatpush1.msra.mxu0 %v399
    %433 = vmatprep.subr.mxu0 0.0
    %434 = vmatpush1.msra.mxu0 %v400
    %435 = vmatprep.subr.mxu0 0.0
    %436 = vmatpush1.msra.mxu0 %v401
    %437 = vmatprep.subr.mxu0 0.0
    %438 = vmatpush1.msra.mxu0 %v402
    %439 = vmatprep.subr.mxu0 0.0
    %440 = vmatpush1.msra.mxu0 %v403
    %441 = vmatprep.subr.mxu0 0.0
    %442 = vmatpush1.msra.mxu0 %v404
    %443 = vmatprep.subr.mxu0 0.0
    %444 = vmatpush1.msra.mxu0 %v405
    %445 = vmatprep.subr.mxu0 0.0
    %446 = vmatpush1.msra.mxu0 0.0
    %447 = vmatprep.subr.mxu0 0.0
    %448 = vmatpush1.msra.mxu0 0.0
    %449 = vmatprep.subr.mxu0 0.0
    %450 = vmatpush1.msra.mxu0 0.0
    %451 = vmatprep.subr.mxu0 0.0
    %452 = vmatpush1.msra.mxu0 0.0
    %453 = vmatprep.subr.mxu0 0.0
    %454 = vmatpush1.msra.mxu0 0.0
    %455 = vmatprep.subr.mxu0 0.0
    %456 = vmatpush1.msra.mxu0 0.0
    %457 = vmatprep.subr.mxu0 0.0
    %458 = vmatpush1.msra.mxu0 0.0
    %459 = vmatprep.subr.mxu0 0.0
    %460 = vmatpush1.msra.mxu0 0.0
    %461 = vmatprep.subr.mxu0 0.0
    %462 = vmatpush1.msra.mxu0 0.0
    %463 = vmatprep.subr.mxu0 0.0
    %464 = vmatpush1.msra.mxu0 0.0
    %465 = vmatprep.subr.mxu0 0.0
    %466 = vmatpush1.msra.mxu0 0.0
    %467 = vmatprep.subr.mxu0 0.0
    %468 = vmatpush1.msra.mxu0 0.0
    %469 = vmatprep.subr.mxu0 0.0
    %470 = vmatpush1.msra.mxu0 0.0
    %471 = vmatprep.subr.mxu0 0.0
    %472 = vmatpush1.msra.mxu0 0.0
    %473 = vmatprep.subr.mxu0 0.0
    %474 = vmatpush1.msra.mxu0 0.0
    %475 = vmatprep.subr.mxu0 0.0
    %476 = vmatpush1.msra.mxu0 0.0
    %477 = vmatprep.mubr.f32.mxu0 0.0
    %478 = vmatmul.mubr.f32.gmra.mrb[0].mxu0 %v374
    %v479 = vpop.f32.mrb[0].mxu0
    %v480 = vadd.f32 %v411, %v479
    %v481 = vpop.f32.mrb[0].mxu0
    %482 = vdwg.mxu0
    %v483 = vadd.f32 %v168, %v480
    %v484 = vtanh.pop %v483
    %v485 = vld [vmem:[#allocation5 + $0x28] sm:$0xff]
    %v486 = vld [vmem:[#allocation5 + $0x60] sm:$0xff]
    %v487 = vld [vmem:[#allocation5 + $0x98] sm:$0xff]
    %v488 = vld [vmem:[#allocation5 + $0xd0] sm:$0xff]
    %v489 = vld [vmem:[#allocation5 + $0x108] sm:$0xff]
    %v490 = vld [vmem:[#allocation5 + $0x140] sm:$0xff]
    %v491 = vld [vmem:[#allocation5 + $0x178] sm:$0xff]
    %v492 = vld [vmem:[#allocation5 + $0x1b0] sm:$0xff]
    %v493 = vld [vmem:[#allocation5 + $0x1e8] sm:$0xff]
    %v494 = vld [vmem:[#allocation5 + $0x220] sm:$0xff]
    %v495 = vld [vmem:[#allocation5 + $0x258] sm:$0xff]
    %v496 = vld [vmem:[#allocation5 + $0x290] sm:$0xff]
    %v497 = vld [vmem:[#allocation5 + $0x2c8] sm:$0xff]
    %v498 = vld [vmem:[#allocation5 + $0x300] sm:$0xff]
    %v499 = vld [vmem:[#allocation5 + $0x338] sm:$0xff]
    %v500 = vld [vmem:[#allocation5 + $0x370] sm:$0xff]
    %v501 = vld [vmem:[#allocation7 + $0x5] sm:$0x1]
    %v503 = vlaneseq
    %v504 = vshrl.u32 %v503, 7
    %v505 = vsub.s32 0, %v504
    %v506 = vrot.slane %v501, %v505
    %508 = vmatprep.subr.mxu0 0.0
    %509 = vmatpush1.msra.mxu0 %v485
    %510 = vmatprep.subr.mxu0 0.0
    %511 = vmatpush1.msra.mxu0 %v486
    %512 = vmatprep.subr.mxu0 0.0
    %513 = vmatpush1.msra.mxu0 %v487
    %514 = vmatprep.subr.mxu0 0.0
    %515 = vmatpush1.msra.mxu0 %v488
    %516 = vmatprep.subr.mxu0 0.0
    %517 = vmatpush1.msra.mxu0 %v489
    %518 = vmatprep.subr.mxu0 0.0
    %519 = vmatpush1.msra.mxu0 %v490
    %520 = vmatprep.subr.mxu0 0.0
    %521 = vmatpush1.msra.mxu0 %v491
    %522 = vmatprep.subr.mxu0 0.0
    %523 = vmatpush1.msra.mxu0 %v492
    %524 = vmatprep.subr.mxu0 0.0
    %525 = vmatpush1.msra.mxu0 %v493
    %526 = vmatprep.subr.mxu0 0.0
    %527 = vmatpush1.msra.mxu0 %v494
    %528 = vmatprep.subr.mxu0 0.0
    %529 = vmatpush1.msra.mxu0 %v495
    %530 = vmatprep.subr.mxu0 0.0
    %531 = vmatpush1.msra.mxu0 %v496
    %532 = vmatprep.subr.mxu0 0.0
    %533 = vmatpush1.msra.mxu0 %v497
    %534 = vmatprep.subr.mxu0 0.0
    %535 = vmatpush1.msra.mxu0 %v498
    %536 = vmatprep.subr.mxu0 0.0
    %537 = vmatpush1.msra.mxu0 %v499
    %538 = vmatprep.subr.mxu0 0.0
    %539 = vmatpush1.msra.mxu0 %v500
    %540 = vmatprep.subr.mxu0 0.0
    %541 = vmatpush1.msra.mxu0 0.0
    %542 = vmatprep.subr.mxu0 0.0
    %543 = vmatpush1.msra.mxu0 0.0
    %544 = vmatprep.subr.mxu0 0.0
    %545 = vmatpush1.msra.mxu0 0.0
    %546 = vmatprep.subr.mxu0 0.0
    %547 = vmatpush1.msra.mxu0 0.0
    %548 = vmatprep.subr.mxu0 0.0
    %549 = vmatpush1.msra.mxu0 0.0
    %550 = vmatprep.subr.mxu0 0.0
    %551 = vmatpush1.msra.mxu0 0.0
    %552 = vmatprep.subr.mxu0 0.0
    %553 = vmatpush1.msra.mxu0 0.0
    %554 = vmatprep.subr.mxu0 0.0
    %555 = vmatpush1.msra.mxu0 0.0
    %556 = vmatprep.subr.mxu0 0.0
    %557 = vmatpush1.msra.mxu0 0.0
    %558 = vmatprep.subr.mxu0 0.0
    %559 = vmatpush1.msra.mxu0 0.0
    %560 = vmatprep.subr.mxu0 0.0
    %561 = vmatpush1.msra.mxu0 0.0
    %562 = vmatprep.subr.mxu0 0.0
    %563 = vmatpush1.msra.mxu0 0.0
    %564 = vmatprep.subr.mxu0 0.0
    %565 = vmatpush1.msra.mxu0 0.0
    %566 = vmatprep.subr.mxu0 0.0
    %567 = vmatpush1.msra.mxu0 0.0
    %568 = vmatprep.subr.mxu0 0.0
    %569 = vmatpush1.msra.mxu0 0.0
    %570 = vmatprep.subr.mxu0 0.0
    %571 = vmatpush1.msra.mxu0 0.0
    %572 = vmatprep.mubr.f32.mxu0 0.0
    %573 = vmatmul.mubr.f32.gmra.mrb[0].mxu0 %v484
    %v574 = vpop.f32.mrb[0].mxu0
    %v575 = vadd.f32 %v506, %v574
    %v576 = vpop.f32.mrb[0].mxu0
    %577 = vdwg.mxu0
    %v578 = vtanh.pop %v575
    %v579 = vld [vmem:[#allocation5 + $0x30] sm:$0xff]
    %v580 = vld [vmem:[#allocation5 + $0x68] sm:$0xff]
    %v581 = vld [vmem:[#allocation5 + $0xa0] sm:$0xff]
    %v582 = vld [vmem:[#allocation5 + $0xd8] sm:$0xff]
    %v583 = vld [vmem:[#allocation5 + $0x110] sm:$0xff]
    %v584 = vld [vmem:[#allocation5 + $0x148] sm:$0xff]
    %v585 = vld [vmem:[#allocation5 + $0x180] sm:$0xff]
    %v586 = vld [vmem:[#allocation5 + $0x1b8] sm:$0xff]
    %v587 = vld [vmem:[#allocation5 + $0x1f0] sm:$0xff]
    %v588 = vld [vmem:[#allocation5 + $0x228] sm:$0xff]
    %v589 = vld [vmem:[#allocation5 + $0x260] sm:$0xff]
    %v590 = vld [vmem:[#allocation5 + $0x298] sm:$0xff]
    %v591 = vld [vmem:[#allocation5 + $0x2d0] sm:$0xff]
    %v592 = vld [vmem:[#allocation5 + $0x308] sm:$0xff]
    %v593 = vld [vmem:[#allocation5 + $0x340] sm:$0xff]
    %v594 = vld [vmem:[#allocation5 + $0x378] sm:$0xff]
    %v595 = vld [vmem:[#allocation7 + $0x6] sm:$0x1]
    %v597 = vlaneseq
    %v598 = vshrl.u32 %v597, 7
    %v599 = vsub.s32 0, %v598
    %v600 = vrot.slane %v595, %v599
    %602 = vmatprep.subr.mxu0 0.0
    %603 = vmatpush1.msra.mxu0 %v579
    %604 = vmatprep.subr.mxu0 0.0
    %605 = vmatpush1.msra.mxu0 %v580
    %606 = vmatprep.subr.mxu0 0.0
    %607 = vmatpush1.msra.mxu0 %v581
    %608 = vmatprep.subr.mxu0 0.0
    %609 = vmatpush1.msra.mxu0 %v582
    %610 = vmatprep.subr.mxu0 0.0
    %611 = vmatpush1.msra.mxu0 %v583
    %612 = vmatprep.subr.mxu0 0.0
    %613 = vmatpush1.msra.mxu0 %v584
    %614 = vmatprep.subr.mxu0 0.0
    %615 = vmatpush1.msra.mxu0 %v585
    %616 = vmatprep.subr.mxu0 0.0
    %617 = vmatpush1.msra.mxu0 %v586
    %618 = vmatprep.subr.mxu0 0.0
    %619 = vmatpush1.msra.mxu0 %v587
    %620 = vmatprep.subr.mxu0 0.0
    %621 = vmatpush1.msra.mxu0 %v588
    %622 = vmatprep.subr.mxu0 0.0
    %623 = vmatpush1.msra.mxu0 %v589
    %624 = vmatprep.subr.mxu0 0.0
    %625 = vmatpush1.msra.mxu0 %v590
    %626 = vmatprep.subr.mxu0 0.0
    %627 = vmatpush1.msra.mxu0 %v591
    %628 = vmatprep.subr.mxu0 0.0
    %629 = vmatpush1.msra.mxu0 %v592
    %630 = vmatprep.subr.mxu0 0.0
    %631 = vmatpush1.msra.mxu0 %v593
    %632 = vmatprep.subr.mxu0 0.0
    %633 = vmatpush1.msra.mxu0 %v594
    %634 = vmatprep.subr.mxu0 0.0
    %635 = vmatpush1.msra.mxu0 0.0
    %636 = vmatprep.subr.mxu0 0.0
    %637 = vmatpush1.msra.mxu0 0.0
    %638 = vmatprep.subr.mxu0 0.0
    %639 = vmatpush1.msra.mxu0 0.0
    %640 = vmatprep.subr.mxu0 0.0
    %641 = vmatpush1.msra.mxu0 0.0
    %642 = vmatprep.subr.mxu0 0.0
    %643 = vmatpush1.msra.mxu0 0.0
    %644 = vmatprep.subr.mxu0 0.0
    %645 = vmatpush1.msra.mxu0 0.0
    %646 = vmatprep.subr.mxu0 0.0
    %647 = vmatpush1.msra.mxu0 0.0
    %648 = vmatprep.subr.mxu0 0.0
    %649 = vmatpush1.msra.mxu0 0.0
    %650 = vmatprep.subr.mxu0 0.0
    %651 = vmatpush1.msra.mxu0 0.0
    %652 = vmatprep.subr.mxu0 0.0
    %653 = vmatpush1.msra.mxu0 0.0
    %654 = vmatprep.subr.mxu0 0.0
    %655 = vmatpush1.msra.mxu0 0.0
    %656 = vmatprep.subr.mxu0 0.0
    %657 = vmatpush1.msra.mxu0 0.0
    %658 = vmatprep.subr.mxu0 0.0
    %659 = vmatpush1.msra.mxu0 0.0
    %660 = vmatprep.subr.mxu0 0.0
    %661 = vmatpush1.msra.mxu0 0.0
    %662 = vmatprep.subr.mxu0 0.0
    %663 = vmatpush1.msra.mxu0 0.0
    %664 = vmatprep.subr.mxu0 0.0
    %665 = vmatpush1.msra.mxu0 0.0
    %666 = vmatprep.mubr.f32.mxu0 0.0
    %667 = vmatmul.mubr.f32.gmra.mrb[0].mxu0 %v578
    %v668 = vpop.f32.mrb[0].mxu0
    %v669 = vadd.f32 %v600, %v668
    %v670 = vpop.f32.mrb[0].mxu0
    %671 = vdwg.mxu0
    %v672 = vtanh.pop %v669
    %v673 = vld [vmem:[#allocation7 + $0x7] sm:$0x1]
    %v674 = vsub.f32 %v54, %v672
    %v675 = vmul.f32 %v674, %v674
    %v677 = vlaneseq
    %v678 = vshrl.u32 %v677, 7
    %v679 = vsub.s32 0, %v678
    %v680 = vrot.slane %v673, %v679
    %v682 = vmul.f32 %v675, %v680
    %683 = vadd.xlane.f32.xlu0 %v682
    %v684 = vpop.xlane.xlu0 %683
    %v685 = vadd.f32 %v374, %v672
    %vm686 = vcmp.eq.s32.totalorder %v359, 16
    %v687 = vsel %vm686, %v380, 0.0
    %v688 = vadd.f32 %v685, %v687
    %vm689 = vcmp.eq.s32.totalorder %v359, 17
    %v690 = vsel %vm689, %v684, 0.0
    %v691 = vadd.f32 %v688, %v690
    %vm692 = vcmp.eq.s32.totalorder %v359, 18
    %v693 = vsel %vm692, %v389, 0.0
    %v694 = vadd.f32 %v691, %v693
    %vm695 = vcmp.eq.s32.totalorder %v359, 19
    %v696 = vsel %vm695, %v385, 0.0
    %v697 = vadd.f32 %v694, %v696
    %698 = vst [vmem:[#allocation8] sm:$0xff] %v697
    // Predicated region
    $region26: #{tpu_custom_call.1} parent=1 // pred_check
      _
    $region27: #{tpu_custom_call.1} parent=1 // pred_check_branch
      %700 = sbr.rel (0) target = $region29
    $region28: #{tpu_custom_call.1} parent=1 // pred_region
      %s702 = ssub.s32 128, 128
      %703 = vsyncadd [#allocation4], %s702
      %s705 = sshll.u32 [#allocation8], 4
      %s706 = int_to_ptr.vmem [resolvable:$true] %s705
      %708 = dma.vmem_to_hbm [thread:$0]  %s706, 128, %s3, [#allocation4]
    $region29: #{tpu_custom_call.1} parent=1 // pred_fallthru
      _
    // Predicated region
    $region30: #{tpu_custom_call.1} parent=1 // pred_check
      _
    $region31: #{tpu_custom_call.1} parent=1 // pred_check_branch
      %710 = sbr.rel (0) target = $region33
    $region32: #{tpu_custom_call.1} parent=1 // pred_region
      %711 = dma.done [#allocation4], 128
    $region33: #{tpu_custom_call.1} parent=1 // pred_fallthru
      _
    %712 = vsyncpa [#allocation3], 1
    %713 = vsyncpa [#allocation6], 1
    %714 = vsyncpa [#allocation4], 1

</llo_original>
